<compile_context>
chip_gen: v5e
topology: v5e:2x2
jax: 0.10.0
libtpu: 0.0.40
codegen_flags: <defaults>
</compile_context>

<pallas_src>
import jax
import jax.numpy as jnp
from jax.experimental import pallas as pl
from jax.experimental.pallas import tpu as pltpu


def _sigmoid(x):
    return 1.0 / (1.0 + jnp.exp(-x))


# ----------------------------------------------------------------------------
# Pallas kernel: one bidirectional LSTM layer, both directions fused.
# ----------------------------------------------------------------------------
def _bilstm_fused_kernel(gx_ref, whh_ref, h0_ref, c0_ref, y_ref, h_ref, c_ref):
    """Fused bidirectional LSTM recurrence.

    gx_ref : (Tblk, B, 4*H) precomputed input-gate pre-activations.  Row for combined
             step t holds [i_f|i_b|f_f|f_b|g_f|g_b|o_f|o_b], where the *_f part is for
             forward time t and the *_b part for backward time T-1-t.
    whh_ref: (H, 4*H) per-gate block-diagonal recurrent weight for h_cat = [h_f|h_b].
    y_ref  : (T, B, H) full layer output, resident in VMEM for the whole grid.
    h_ref, c_ref : (B, H) combined state; double as the cross-grid-step carry and the
             final (h_T, c_T) outputs.
    """
    i = pl.program_id(0)
    tblk = gx_ref.shape[0]
    T = y_ref.shape[0]
    H = h_ref.shape[-1]
    Hh = H // 2

    @pl.when(i == 0)
    def _():
        h_ref[...] = h0_ref[...]
        c_ref[...] = c0_ref[...]

    whh = whh_ref[...]          # (H, 4H), resident

    def step(s, carry):
        h, c = carry
        t = i * tblk + s
        # One MXU matmul per step; output row is 4*H lanes wide (128 for H=32).
        g = gx_ref[s] + jnp.dot(h, whh, preferred_element_type=jnp.float32)  # (B, 4H)
        # Whole-row activations (one EUP pass each), then slice per gate.
        sig = _sigmoid(g)
        tan = jnp.tanh(g)
        i_g = sig[:, 0 * H:1 * H]
        f_g = sig[:, 1 * H:2 * H]
        g_g = tan[:, 2 * H:3 * H]
        o_g = sig[:, 3 * H:4 * H]
        c_new = f_g * c + i_g * g_g
        h_new = o_g * jnp.tanh(c_new)
        # Forward half belongs to output time t, backward half to time T-1-t.
        y_ref[t, :, 0:Hh] = h_new[:, 0:Hh]
        y_ref[T - 1 - t, :, Hh:H] = h_new[:, Hh:H]
        return h_new, c_new

    h_fin, c_fin = jax.lax.fori_loop(0, tblk, step, (h_ref[...], c_ref[...]),
                                     unroll=True)
    h_ref[...] = h_fin
    c_ref[...] = c_fin


# ----------------------------------------------------------------------------
# Wrapper glue for one fused bidirectional layer.
# ----------------------------------------------------------------------------
def _fuse_gate_blockdiag(whh_f, whh_b):
    """Build the (H, 4H) per-gate block-diagonal recurrent weight from two (Hh, 4Hh)."""
    Hh = whh_f.shape[0]
    wf = whh_f.reshape(Hh, 4, Hh)
    wb = whh_b.reshape(Hh, 4, Hh)
    top = jnp.concatenate([wf, jnp.zeros_like(wf)], axis=-1)   # fwd rows -> fwd cols
    bot = jnp.concatenate([jnp.zeros_like(wb), wb], axis=-1)   # bwd rows -> bwd cols
    return jnp.concatenate([top, bot], axis=0).reshape(2 * Hh, 8 * Hh)


def _pick_tblk(T, max_blk=32):
    """Largest divisor of T not exceeding max_blk (timesteps per grid step)."""
    for cand in range(min(T, max_blk), 0, -1):
        if T % cand == 0:
            return cand
    return 1


def bilstm_layer_fused(x_tbe, p_fwd, p_bwd, h0_f, c0_f, h0_b, c0_b):
    """One bidirectional LSTM layer (both directions in a single pallas_call).

    x_tbe : (T, B, Din) time-major input.
    p_*   : (w_ih (Din, 4Hh), w_hh (Hh, 4Hh), b (1, 4Hh))  — transposed PyTorch weights.
    Returns y (T, B, H), h_T (B, H) = [h_f|h_b], c_T (B, H).
    """
    T, B, _ = x_tbe.shape
    Hh = p_fwd[1].shape[0]
    H = 2 * Hh
    hp = jax.lax.Precision.HIGHEST

    # --- glue: batched input projection for both directions (no serial dependency) ---
    gx_f = jnp.einsum("tbd,dg->tbg", x_tbe, p_fwd[0], precision=hp) + p_fwd[2]
    gx_b = jnp.einsum("tbd,dg->tbg", x_tbe[::-1], p_bwd[0], precision=hp) + p_bwd[2]
    # Interleave per gate so row t = [i_f|i_b|f_f|f_b|g_f|g_b|o_f|o_b] for forward
    # time t / backward time T-1-t.
    gx = jnp.concatenate(
        [gx_f.reshape(T, B, 4, Hh), gx_b.reshape(T, B, 4, Hh)], axis=-1
    ).reshape(T, B, 4 * H)

    whh = _fuse_gate_blockdiag(p_fwd[1], p_bwd[1])     # (H, 4H)
    h0 = jnp.concatenate([h0_f, h0_b], axis=-1)        # (B, H)
    c0 = jnp.concatenate([c0_f, c0_b], axis=-1)

    tblk = _pick_tblk(T)
    nb = T // tblk

    y, h_t, c_t = pl.pallas_call(
        _bilstm_fused_kernel,
        grid=(nb,),
        in_specs=[
            pl.BlockSpec((tblk, B, 4 * H), lambda i: (i, 0, 0)),   # gx (pipelined)
            pl.BlockSpec((H, 4 * H), lambda i: (0, 0)),            # W_hh (resident)
            pl.BlockSpec((B, H), lambda i: (0, 0)),                # h0
            pl.BlockSpec((B, H), lambda i: (0, 0)),                # c0
        ],
        out_specs=[
            pl.BlockSpec((T, B, H), lambda i: (0, 0, 0)),          # y resident in VMEM
            pl.BlockSpec((B, H), lambda i: (0, 0)),                # h carry / h_T
            pl.BlockSpec((B, H), lambda i: (0, 0)),                # c carry / c_T
        ],
        out_shape=(
            jax.ShapeDtypeStruct((T, B, H), jnp.float32),
            jax.ShapeDtypeStruct((B, H), jnp.float32),
            jax.ShapeDtypeStruct((B, H), jnp.float32),
        ),
        compiler_params=pltpu.CompilerParams(
            dimension_semantics=("arbitrary",)),       # sequential recurrence
    )(gx, whh, h0, c0)
    return y, h_t, c_t


# ----------------------------------------------------------------------------
# EncoderRNN forward (wrapper glue + fused bidirectional LSTM kernels).
# ----------------------------------------------------------------------------
@jax.jit
def encoder_rnn_forward(params, input_ids, pos_tensor, hidden):
    h0, c0 = hidden                                     # (4, B, Hh) each
    B, _ = input_ids.shape
    Hh = h0.shape[-1]

    # Embedding lookup + positional scaling.
    # TODO(synk): could be fused into the layer-0 input projection with a
    # scalar-prefetch gather kernel; kept as XLA glue for robustness.
    emb = params["embedding"][input_ids] * pos_tensor.reshape(B, -1, 1)   # (B, T, E)
    x = jnp.transpose(emb, (1, 0, 2))                                     # (T, B, E)

    # Layer 0 (input dim = E).  Inter-layer dropout: eval-mode no-op, omitted.
    y0, h0t, c0t = bilstm_layer_fused(x, params["l0_fwd"], params["l0_bwd"],
                                      h0[0], c0[0], h0[1], c0[1])
    # Layer 1 (input dim = H).
    y1, h1t, c1t = bilstm_layer_fused(y0, params["l1_fwd"], params["l1_bwd"],
                                      h0[2], c0[2], h0[3], c0[3])

    output = jnp.transpose(y1, (1, 0, 2))                                 # (B, T, H)
    h_n = jnp.stack([h0t[:, :Hh], h0t[:, Hh:], h1t[:, :Hh], h1t[:, Hh:]], axis=0)
    c_n = jnp.stack([c0t[:, :Hh], c0t[:, Hh:], c1t[:, :Hh], c1t[:, Hh:]], axis=0)
    return output, (h_n, c_n)


# ----------------------------------------------------------------------------
# Pure-JAX reference (per-direction lax.scan) for correctness checking.
# ----------------------------------------------------------------------------
def _lstm_direction_ref(x_tbe, w_ih, w_hh, b, h0, c0, reverse):
    Hh = h0.shape[-1]
    hp = jax.lax.Precision.HIGHEST
    seq = x_tbe[::-1] if reverse else x_tbe

    def step(carry, x):
        h, c = carry
        g = (jnp.dot(x, w_ih, precision=hp) + jnp.dot(h, w_hh, precision=hp) + b)
        i = _sigmoid(g[:, :Hh])
        f = _sigmoid(g[:, Hh:2 * Hh])
        gg = jnp.tanh(g[:, 2 * Hh:3 * Hh])
        o = _sigmoid(g[:, 3 * Hh:])
        c2 = f * c + i * gg
        h2 = o * jnp.tanh(c2)
        return (h2, c2), h2

    (h_t, c_t), ys = jax.lax.scan(step, (h0, c0), seq)
    if reverse:
        ys = ys[::-1]
    return ys, h_t, c_t


def encoder_rnn_forward_ref(params, input_ids, pos_tensor, hidden):
    h0, c0 = hidden
    B, _ = input_ids.shape
    emb = params["embedding"][input_ids] * pos_tensor.reshape(B, -1, 1)
    x = jnp.transpose(emb, (1, 0, 2))
    y0f, h0f, c0f = _lstm_direction_ref(x, *params["l0_fwd"], h0[0], c0[0], False)
    y0b, h0b, c0b = _lstm_direction_ref(x, *params["l0_bwd"], h0[1], c0[1], True)
    y0 = jnp.concatenate([y0f, y0b], axis=-1)
    y1f, h1f, c1f = _lstm_direction_ref(y0, *params["l1_fwd"], h0[2], c0[2], False)
    y1b, h1b, c1b = _lstm_direction_ref(y0, *params["l1_bwd"], h0[3], c0[3], True)
    y1 = jnp.concatenate([y1f, y1b], axis=-1)
    out = jnp.transpose(y1, (1, 0, 2))
    return out, (jnp.stack([h0f, h0b, h1f, h1b]), jnp.stack([c0f, c0b, c1f, c1b]))


# ----------------------------------------------------------------------------
# Deterministic parameter construction.
# ----------------------------------------------------------------------------
def init_params(key, vocab_size, embedding_dim, hidden_dim):
    Hh = hidden_dim // 2
    scale = 1.0 / (Hh ** 0.5)
    # 1 key for the embedding + 4 tensors for each of the 4 LSTM directions.
    keys = jax.random.split(key, 1 + 4 * 4)
    ki = iter(keys)

    def lstm_dir_params(din):
        w_ih = jax.random.uniform(next(ki), (din, 4 * Hh), jnp.float32, -scale, scale)
        w_hh = jax.random.uniform(next(ki), (Hh, 4 * Hh), jnp.float32, -scale, scale)
        b_ih = jax.random.uniform(next(ki), (1, 4 * Hh), jnp.float32, -scale, scale)
        b_hh = jax.random.uniform(next(ki), (1, 4 * Hh), jnp.float32, -scale, scale)
        return (w_ih, w_hh, b_ih + b_hh)

    return {
        "embedding": jax.random.normal(next(ki), (vocab_size, embedding_dim),
                                       jnp.float32),
        "l0_fwd": lstm_dir_params(embedding_dim),
        "l0_bwd": lstm_dir_params(embedding_dim),
        "l1_fwd": lstm_dir_params(hidden_dim),
        "l1_bwd": lstm_dir_params(hidden_dim),
    }


if __name__ == "__main__":
    # Small config consistent with the module's forward.
    batch = 2
    seq = 8
    embedding_dim = 16
    hidden_dim = 32          # per-direction hidden = 16; 4*H = 128 (lane-dense gates)
    vocab_size = 21          # embedding_size + 1

    key = jax.random.PRNGKey(0)
    k_par, k_in, k_pos, k_h, k_c = jax.random.split(key, 5)

    params = init_params(k_par, vocab_size, embedding_dim, hidden_dim)

    input_ids = jax.random.randint(k_in, (batch, seq), 0, vocab_size)
    pos_tensor = jax.random.uniform(k_pos, (batch, seq), jnp.float32)
    h0 = jax.random.normal(k_h, (4, batch, hidden_dim // 2), jnp.float32)
    c0 = jax.random.normal(k_c, (4, batch, hidden_dim // 2), jnp.float32)

    out, (h_n, c_n) = encoder_rnn_forward(params, input_ids, pos_tensor, (h0, c0))
    jax.block_until_ready((out, h_n, c_n))

    # Correctness check vs. pure-JAX reference (fp32; tolerance covers MXU pass order).
    out_r, (h_r, c_r) = encoder_rnn_forward_ref(params, input_ids, pos_tensor, (h0, c0))
    assert out.shape == (batch, seq, hidden_dim)
    assert h_n.shape == (4, batch, hidden_dim // 2)
    assert c_n.shape == (4, batch, hidden_dim // 2)
    assert jnp.allclose(out, out_r, atol=1e-3), "output mismatch"
    assert jnp.allclose(h_n, h_r, atol=1e-3), "h_n mismatch"
    assert jnp.allclose(c_n, c_r, atol=1e-3), "c_n mismatch"

    print("KERNEL_OK")
</pallas_src>

<mosaic_0001>
module attributes {stable_mosaic.version = 11 : i64} {
  func.func @_bilstm_fused_kernel(%arg0: i32, %arg1: memref<8x2x128xf32, #tpu.memory_space<vmem>>, %arg2: memref<32x128xf32, #tpu.memory_space<vmem>>, %arg3: memref<2x32xf32, #tpu.memory_space<vmem>>, %arg4: memref<2x32xf32, #tpu.memory_space<vmem>>, %arg5: memref<8x2x32xf32, #tpu.memory_space<vmem>>, %arg6: memref<2x32xf32, #tpu.memory_space<vmem>>, %arg7: memref<2x32xf32, #tpu.memory_space<vmem>>) attributes {dimension_semantics = [#tpu.dimension_semantics<arbitrary>], iteration_bounds = array<i64: 1>, scalar_prefetch = 0 : i64, scratch_operands = 0 : i64, tpu.core_type = #tpu.core_type<tc>, window_params = [{transform_indices = @transform_0, window_bounds = array<i64: 8, 2, 128>}, {pipeline_mode = #tpu.pipeline_mode<synchronous>, transform_indices = @transform_1, window_bounds = array<i64: 32, 128>}, {pipeline_mode = #tpu.pipeline_mode<synchronous>, transform_indices = @transform_2, window_bounds = array<i64: 2, 32>}, {pipeline_mode = #tpu.pipeline_mode<synchronous>, transform_indices = @transform_3, window_bounds = array<i64: 2, 32>}, {pipeline_mode = #tpu.pipeline_mode<synchronous>, transform_indices = @transform_4, window_bounds = array<i64: 8, 2, 32>}, {pipeline_mode = #tpu.pipeline_mode<synchronous>, transform_indices = @transform_5, window_bounds = array<i64: 2, 32>}, {pipeline_mode = #tpu.pipeline_mode<synchronous>, transform_indices = @transform_6, window_bounds = array<i64: 2, 32>}]} {
    %c0_i32 = arith.constant 0 : i32
    %0 = arith.cmpi eq, %arg0, %c0_i32 : i32
    %1 = arith.extui %0 : i1 to i32
    %c0_i32_0 = arith.constant 0 : i32
    %2 = arith.cmpi ne, %1, %c0_i32_0 : i32
    scf.if %2 {
      %c0_105 = arith.constant 0 : index
      %c0_106 = arith.constant 0 : index
      %288 = vector.load %arg3[%c0_105, %c0_106] : memref<2x32xf32, #tpu.memory_space<vmem>>, vector<2x32xf32>
      %c0_107 = arith.constant 0 : index
      %c0_108 = arith.constant 0 : index
      %289 = vector.load %arg6[%c0_107, %c0_108] : memref<2x32xf32, #tpu.memory_space<vmem>>, vector<2x32xf32>
      tpu.vector_store %arg6[%c0_107, %c0_108], %288 {strides = array<i32>} : memref<2x32xf32, #tpu.memory_space<vmem>>, vector<2x32xf32>,
      %c0_109 = arith.constant 0 : index
      %c0_110 = arith.constant 0 : index
      %290 = vector.load %arg4[%c0_109, %c0_110] : memref<2x32xf32, #tpu.memory_space<vmem>>, vector<2x32xf32>
      %c0_111 = arith.constant 0 : index
      %c0_112 = arith.constant 0 : index
      %291 = vector.load %arg7[%c0_111, %c0_112] : memref<2x32xf32, #tpu.memory_space<vmem>>, vector<2x32xf32>
      tpu.vector_store %arg7[%c0_111, %c0_112], %290 {strides = array<i32>} : memref<2x32xf32, #tpu.memory_space<vmem>>, vector<2x32xf32>,
    } else {
    }
    %c0 = arith.constant 0 : index
    %c0_1 = arith.constant 0 : index
    %3 = vector.load %arg2[%c0, %c0_1] : memref<32x128xf32, #tpu.memory_space<vmem>>, vector<32x128xf32>
    %c0_2 = arith.constant 0 : index
    %c0_3 = arith.constant 0 : index
    %4 = vector.load %arg6[%c0_2, %c0_3] : memref<2x32xf32, #tpu.memory_space<vmem>>, vector<2x32xf32>
    %c0_4 = arith.constant 0 : index
    %c0_5 = arith.constant 0 : index
    %5 = vector.load %arg7[%c0_4, %c0_5] : memref<2x32xf32, #tpu.memory_space<vmem>>, vector<2x32xf32>
    %c0_i32_6 = arith.constant 0 : i32
    %c8_i32 = arith.constant 8 : i32
    %6 = arith.muli %arg0, %c8_i32 : i32
    %7 = arith.addi %6, %c0_i32_6 : i32
    %8 = arith.index_cast %c0_i32_6 : i32 to index
    %c0_7 = arith.constant 0 : index
    %c0_8 = arith.constant 0 : index
    %9 = vector.load %arg1[%8, %c0_7, %c0_8] : memref<8x2x128xf32, #tpu.memory_space<vmem>>, vector<1x2x128xf32>
    %10 = vector.shape_cast %9 : vector<1x2x128xf32> to vector<2x128xf32>
    %cst = arith.constant dense<0.000000e+00> : vector<2x128xf32>
    %11 = tpu.matmul %4, %3, %cst {dimension_numbers = #tpu.dot_dimension_numbers<[1], [0], [0], [1], [0, 0, 1, 1], [], []>} : vector<2x32xf32>, vector<32x128xf32>, vector<2x128xf32> -> vector<2x128xf32>
    %12 = arith.addf %10, %11 : vector<2x128xf32>
    %cst_9 = arith.constant 0.000000e+00 : f32
    %13 = vector.broadcast %cst_9 : f32 to vector<2x128xf32>
    %14 = arith.subf %13, %12 : vector<2x128xf32>
    %15 = math.exp %14 : vector<2x128xf32>
    %cst_10 = arith.constant 1.000000e+00 : f32
    %16 = vector.broadcast %cst_10 : f32 to vector<2x128xf32>
    %17 = arith.addf %16, %15 : vector<2x128xf32>
    %cst_11 = arith.constant 1.000000e+00 : f32
    %18 = vector.broadcast %cst_11 : f32 to vector<2x128xf32>
    %19 = arith.divf %18, %17 : vector<2x128xf32>
    %20 = math.tanh %12 : vector<2x128xf32>
    %21 = vector.extract_strided_slice %19 {offsets = [0, 0], sizes = [2, 32], strides = [1, 1]} : vector<2x128xf32> to vector<2x32xf32>
    %22 = vector.extract_strided_slice %19 {offsets = [0, 32], sizes = [2, 32], strides = [1, 1]} : vector<2x128xf32> to vector<2x32xf32>
    %23 = vector.extract_strided_slice %20 {offsets = [0, 64], sizes = [2, 32], strides = [1, 1]} : vector<2x128xf32> to vector<2x32xf32>
    %24 = vector.extract_strided_slice %19 {offsets = [0, 96], sizes = [2, 32], strides = [1, 1]} : vector<2x128xf32> to vector<2x32xf32>
    %25 = arith.mulf %22, %5 : vector<2x32xf32>
    %26 = arith.mulf %21, %23 : vector<2x32xf32>
    %27 = arith.addf %25, %26 : vector<2x32xf32>
    %28 = math.tanh %27 : vector<2x32xf32>
    %29 = arith.mulf %24, %28 : vector<2x32xf32>
    %30 = vector.extract_strided_slice %29 {offsets = [0, 0], sizes = [2, 16], strides = [1, 1]} : vector<2x32xf32> to vector<2x16xf32>
    %31 = arith.index_cast %7 : i32 to index
    %c0_12 = arith.constant 0 : index
    %c0_13 = arith.constant 0 : index
    %32 = vector.load %arg5[%31, %c0_12, %c0_13] : memref<8x2x32xf32, #tpu.memory_space<vmem>>, vector<1x2x16xf32>
    %33 = vector.shape_cast %32 : vector<1x2x16xf32> to vector<2x16xf32>
    %34 = vector.shape_cast %30 : vector<2x16xf32> to vector<1x2x16xf32>
    tpu.vector_store %arg5[%31, %c0_12, %c0_13], %34 {strides = array<i32>} : memref<8x2x32xf32, #tpu.memory_space<vmem>>, vector<1x2x16xf32>,
    %35 = vector.extract_strided_slice %29 {offsets = [0, 16], sizes = [2, 16], strides = [1, 1]} : vector<2x32xf32> to vector<2x16xf32>
    %c7_i32 = arith.constant 7 : i32
    %36 = arith.subi %c7_i32, %7 : i32
    %37 = arith.index_cast %36 : i32 to index
    %c0_14 = arith.constant 0 : index
    %c16 = arith.constant 16 : index
    %38 = vector.load %arg5[%37, %c0_14, %c16] : memref<8x2x32xf32, #tpu.memory_space<vmem>>, vector<1x2x16xf32>
    %39 = vector.shape_cast %38 : vector<1x2x16xf32> to vector<2x16xf32>
    %40 = vector.shape_cast %35 : vector<2x16xf32> to vector<1x2x16xf32>
    tpu.vector_store %arg5[%37, %c0_14, %c16], %40 {strides = array<i32>} : memref<8x2x32xf32, #tpu.memory_space<vmem>>, vector<1x2x16xf32>,
    %c1_i32 = arith.constant 1 : i32
    %c8_i32_15 = arith.constant 8 : i32
    %41 = arith.muli %arg0, %c8_i32_15 : i32
    %42 = arith.addi %41, %c1_i32 : i32
    %43 = arith.index_cast %c1_i32 : i32 to index
    %c0_16 = arith.constant 0 : index
    %c0_17 = arith.constant 0 : index
    %44 = vector.load %arg1[%43, %c0_16, %c0_17] : memref<8x2x128xf32, #tpu.memory_space<vmem>>, vector<1x2x128xf32>
    %45 = vector.shape_cast %44 : vector<1x2x128xf32> to vector<2x128xf32>
    %cst_18 = arith.constant dense<0.000000e+00> : vector<2x128xf32>
    %46 = tpu.matmul %29, %3, %cst_18 {dimension_numbers = #tpu.dot_dimension_numbers<[1], [0], [0], [1], [0, 0, 1, 1], [], []>} : vector<2x32xf32>, vector<32x128xf32>, vector<2x128xf32> -> vector<2x128xf32>
    %47 = arith.addf %45, %46 : vector<2x128xf32>
    %cst_19 = arith.constant 0.000000e+00 : f32
    %48 = vector.broadcast %cst_19 : f32 to vector<2x128xf32>
    %49 = arith.subf %48, %47 : vector<2x128xf32>
    %50 = math.exp %49 : vector<2x128xf32>
    %cst_20 = arith.constant 1.000000e+00 : f32
    %51 = vector.broadcast %cst_20 : f32 to vector<2x128xf32>
    %52 = arith.addf %51, %50 : vector<2x128xf32>
    %cst_21 = arith.constant 1.000000e+00 : f32
    %53 = vector.broadcast %cst_21 : f32 to vector<2x128xf32>
    %54 = arith.divf %53, %52 : vector<2x128xf32>
    %55 = math.tanh %47 : vector<2x128xf32>
    %56 = vector.extract_strided_slice %54 {offsets = [0, 0], sizes = [2, 32], strides = [1, 1]} : vector<2x128xf32> to vector<2x32xf32>
    %57 = vector.extract_strided_slice %54 {offsets = [0, 32], sizes = [2, 32], strides = [1, 1]} : vector<2x128xf32> to vector<2x32xf32>
    %58 = vector.extract_strided_slice %55 {offsets = [0, 64], sizes = [2, 32], strides = [1, 1]} : vector<2x128xf32> to vector<2x32xf32>
    %59 = vector.extract_strided_slice %54 {offsets = [0, 96], sizes = [2, 32], strides = [1, 1]} : vector<2x128xf32> to vector<2x32xf32>
    %60 = arith.mulf %57, %27 : vector<2x32xf32>
    %61 = arith.mulf %56, %58 : vector<2x32xf32>
    %62 = arith.addf %60, %61 : vector<2x32xf32>
    %63 = math.tanh %62 : vector<2x32xf32>
    %64 = arith.mulf %59, %63 : vector<2x32xf32>
    %65 = vector.extract_strided_slice %64 {offsets = [0, 0], sizes = [2, 16], strides = [1, 1]} : vector<2x32xf32> to vector<2x16xf32>
    %66 = arith.index_cast %42 : i32 to index
    %c0_22 = arith.constant 0 : index
    %c0_23 = arith.constant 0 : index
    %67 = vector.load %arg5[%66, %c0_22, %c0_23] : memref<8x2x32xf32, #tpu.memory_space<vmem>>, vector<1x2x16xf32>
    %68 = vector.shape_cast %67 : vector<1x2x16xf32> to vector<2x16xf32>
    %69 = vector.shape_cast %65 : vector<2x16xf32> to vector<1x2x16xf32>
    tpu.vector_store %arg5[%66, %c0_22, %c0_23], %69 {strides = array<i32>} : memref<8x2x32xf32, #tpu.memory_space<vmem>>, vector<1x2x16xf32>,
    %70 = vector.extract_strided_slice %64 {offsets = [0, 16], sizes = [2, 16], strides = [1, 1]} : vector<2x32xf32> to vector<2x16xf32>
    %c7_i32_24 = arith.constant 7 : i32
    %71 = arith.subi %c7_i32_24, %42 : i32
    %72 = arith.index_cast %71 : i32 to index
    %c0_25 = arith.constant 0 : index
    %c16_26 = arith.constant 16 : index
    %73 = vector.load %arg5[%72, %c0_25, %c16_26] : memref<8x2x32xf32, #tpu.memory_space<vmem>>, vector<1x2x16xf32>
    %74 = vector.shape_cast %73 : vector<1x2x16xf32> to vector<2x16xf32>
    %75 = vector.shape_cast %70 : vector<2x16xf32> to vector<1x2x16xf32>
    tpu.vector_store %arg5[%72, %c0_25, %c16_26], %75 {strides = array<i32>} : memref<8x2x32xf32, #tpu.memory_space<vmem>>, vector<1x2x16xf32>,
    %c2_i32 = arith.constant 2 : i32
    %c8_i32_27 = arith.constant 8 : i32
    %76 = arith.muli %arg0, %c8_i32_27 : i32
    %77 = arith.addi %76, %c2_i32 : i32
    %78 = arith.index_cast %c2_i32 : i32 to index
    %c0_28 = arith.constant 0 : index
    %c0_29 = arith.constant 0 : index
    %79 = vector.load %arg1[%78, %c0_28, %c0_29] : memref<8x2x128xf32, #tpu.memory_space<vmem>>, vector<1x2x128xf32>
    %80 = vector.shape_cast %79 : vector<1x2x128xf32> to vector<2x128xf32>
    %cst_30 = arith.constant dense<0.000000e+00> : vector<2x128xf32>
    %81 = tpu.matmul %64, %3, %cst_30 {dimension_numbers = #tpu.dot_dimension_numbers<[1], [0], [0], [1], [0, 0, 1, 1], [], []>} : vector<2x32xf32>, vector<32x128xf32>, vector<2x128xf32> -> vector<2x128xf32>
    %82 = arith.addf %80, %81 : vector<2x128xf32>
    %cst_31 = arith.constant 0.000000e+00 : f32
    %83 = vector.broadcast %cst_31 : f32 to vector<2x128xf32>
    %84 = arith.subf %83, %82 : vector<2x128xf32>
    %85 = math.exp %84 : vector<2x128xf32>
    %cst_32 = arith.constant 1.000000e+00 : f32
    %86 = vector.broadcast %cst_32 : f32 to vector<2x128xf32>
    %87 = arith.addf %86, %85 : vector<2x128xf32>
    %cst_33 = arith.constant 1.000000e+00 : f32
    %88 = vector.broadcast %cst_33 : f32 to vector<2x128xf32>
    %89 = arith.divf %88, %87 : vector<2x128xf32>
    %90 = math.tanh %82 : vector<2x128xf32>
    %91 = vector.extract_strided_slice %89 {offsets = [0, 0], sizes = [2, 32], strides = [1, 1]} : vector<2x128xf32> to vector<2x32xf32>
    %92 = vector.extract_strided_slice %89 {offsets = [0, 32], sizes = [2, 32], strides = [1, 1]} : vector<2x128xf32> to vector<2x32xf32>
    %93 = vector.extract_strided_slice %90 {offsets = [0, 64], sizes = [2, 32], strides = [1, 1]} : vector<2x128xf32> to vector<2x32xf32>
    %94 = vector.extract_strided_slice %89 {offsets = [0, 96], sizes = [2, 32], strides = [1, 1]} : vector<2x128xf32> to vector<2x32xf32>
    %95 = arith.mulf %92, %62 : vector<2x32xf32>
    %96 = arith.mulf %91, %93 : vector<2x32xf32>
    %97 = arith.addf %95, %96 : vector<2x32xf32>
    %98 = math.tanh %97 : vector<2x32xf32>
    %99 = arith.mulf %94, %98 : vector<2x32xf32>
    %100 = vector.extract_strided_slice %99 {offsets = [0, 0], sizes = [2, 16], strides = [1, 1]} : vector<2x32xf32> to vector<2x16xf32>
    %101 = arith.index_cast %77 : i32 to index
    %c0_34 = arith.constant 0 : index
    %c0_35 = arith.constant 0 : index
    %102 = vector.load %arg5[%101, %c0_34, %c0_35] : memref<8x2x32xf32, #tpu.memory_space<vmem>>, vector<1x2x16xf32>
    %103 = vector.shape_cast %102 : vector<1x2x16xf32> to vector<2x16xf32>
    %104 = vector.shape_cast %100 : vector<2x16xf32> to vector<1x2x16xf32>
    tpu.vector_store %arg5[%101, %c0_34, %c0_35], %104 {strides = array<i32>} : memref<8x2x32xf32, #tpu.memory_space<vmem>>, vector<1x2x16xf32>,
    %105 = vector.extract_strided_slice %99 {offsets = [0, 16], sizes = [2, 16], strides = [1, 1]} : vector<2x32xf32> to vector<2x16xf32>
    %c7_i32_36 = arith.constant 7 : i32
    %106 = arith.subi %c7_i32_36, %77 : i32
    %107 = arith.index_cast %106 : i32 to index
    %c0_37 = arith.constant 0 : index
    %c16_38 = arith.constant 16 : index
    %108 = vector.load %arg5[%107, %c0_37, %c16_38] : memref<8x2x32xf32, #tpu.memory_space<vmem>>, vector<1x2x16xf32>
    %109 = vector.shape_cast %108 : vector<1x2x16xf32> to vector<2x16xf32>
    %110 = vector.shape_cast %105 : vector<2x16xf32> to vector<1x2x16xf32>
    tpu.vector_store %arg5[%107, %c0_37, %c16_38], %110 {strides = array<i32>} : memref<8x2x32xf32, #tpu.memory_space<vmem>>, vector<1x2x16xf32>,
    %c3_i32 = arith.constant 3 : i32
    %c8_i32_39 = arith.constant 8 : i32
    %111 = arith.muli %arg0, %c8_i32_39 : i32
    %112 = arith.addi %111, %c3_i32 : i32
    %113 = arith.index_cast %c3_i32 : i32 to index
    %c0_40 = arith.constant 0 : index
    %c0_41 = arith.constant 0 : index
    %114 = vector.load %arg1[%113, %c0_40, %c0_41] : memref<8x2x128xf32, #tpu.memory_space<vmem>>, vector<1x2x128xf32>
    %115 = vector.shape_cast %114 : vector<1x2x128xf32> to vector<2x128xf32>
    %cst_42 = arith.constant dense<0.000000e+00> : vector<2x128xf32>
    %116 = tpu.matmul %99, %3, %cst_42 {dimension_numbers = #tpu.dot_dimension_numbers<[1], [0], [0], [1], [0, 0, 1, 1], [], []>} : vector<2x32xf32>, vector<32x128xf32>, vector<2x128xf32> -> vector<2x128xf32>
    %117 = arith.addf %115, %116 : vector<2x128xf32>
    %cst_43 = arith.constant 0.000000e+00 : f32
    %118 = vector.broadcast %cst_43 : f32 to vector<2x128xf32>
    %119 = arith.subf %118, %117 : vector<2x128xf32>
    %120 = math.exp %119 : vector<2x128xf32>
    %cst_44 = arith.constant 1.000000e+00 : f32
    %121 = vector.broadcast %cst_44 : f32 to vector<2x128xf32>
    %122 = arith.addf %121, %120 : vector<2x128xf32>
    %cst_45 = arith.constant 1.000000e+00 : f32
    %123 = vector.broadcast %cst_45 : f32 to vector<2x128xf32>
    %124 = arith.divf %123, %122 : vector<2x128xf32>
    %125 = math.tanh %117 : vector<2x128xf32>
    %126 = vector.extract_strided_slice %124 {offsets = [0, 0], sizes = [2, 32], strides = [1, 1]} : vector<2x128xf32> to vector<2x32xf32>
    %127 = vector.extract_strided_slice %124 {offsets = [0, 32], sizes = [2, 32], strides = [1, 1]} : vector<2x128xf32> to vector<2x32xf32>
    %128 = vector.extract_strided_slice %125 {offsets = [0, 64], sizes = [2, 32], strides = [1, 1]} : vector<2x128xf32> to vector<2x32xf32>
    %129 = vector.extract_strided_slice %124 {offsets = [0, 96], sizes = [2, 32], strides = [1, 1]} : vector<2x128xf32> to vector<2x32xf32>
    %130 = arith.mulf %127, %97 : vector<2x32xf32>
    %131 = arith.mulf %126, %128 : vector<2x32xf32>
    %132 = arith.addf %130, %131 : vector<2x32xf32>
    %133 = math.tanh %132 : vector<2x32xf32>
    %134 = arith.mulf %129, %133 : vector<2x32xf32>
    %135 = vector.extract_strided_slice %134 {offsets = [0, 0], sizes = [2, 16], strides = [1, 1]} : vector<2x32xf32> to vector<2x16xf32>
    %136 = arith.index_cast %112 : i32 to index
    %c0_46 = arith.constant 0 : index
    %c0_47 = arith.constant 0 : index
    %137 = vector.load %arg5[%136, %c0_46, %c0_47] : memref<8x2x32xf32, #tpu.memory_space<vmem>>, vector<1x2x16xf32>
    %138 = vector.shape_cast %137 : vector<1x2x16xf32> to vector<2x16xf32>
    %139 = vector.shape_cast %135 : vector<2x16xf32> to vector<1x2x16xf32>
    tpu.vector_store %arg5[%136, %c0_46, %c0_47], %139 {strides = array<i32>} : memref<8x2x32xf32, #tpu.memory_space<vmem>>, vector<1x2x16xf32>,
    %140 = vector.extract_strided_slice %134 {offsets = [0, 16], sizes = [2, 16], strides = [1, 1]} : vector<2x32xf32> to vector<2x16xf32>
    %c7_i32_48 = arith.constant 7 : i32
    %141 = arith.subi %c7_i32_48, %112 : i32
    %142 = arith.index_cast %141 : i32 to index
    %c0_49 = arith.constant 0 : index
    %c16_50 = arith.constant 16 : index
    %143 = vector.load %arg5[%142, %c0_49, %c16_50] : memref<8x2x32xf32, #tpu.memory_space<vmem>>, vector<1x2x16xf32>
    %144 = vector.shape_cast %143 : vector<1x2x16xf32> to vector<2x16xf32>
    %145 = vector.shape_cast %140 : vector<2x16xf32> to vector<1x2x16xf32>
    tpu.vector_store %arg5[%142, %c0_49, %c16_50], %145 {strides = array<i32>} : memref<8x2x32xf32, #tpu.memory_space<vmem>>, vector<1x2x16xf32>,
    %c4_i32 = arith.constant 4 : i32
    %c8_i32_51 = arith.constant 8 : i32
    %146 = arith.muli %arg0, %c8_i32_51 : i32
    %147 = arith.addi %146, %c4_i32 : i32
    %148 = arith.index_cast %c4_i32 : i32 to index
    %c0_52 = arith.constant 0 : index
    %c0_53 = arith.constant 0 : index
    %149 = vector.load %arg1[%148, %c0_52, %c0_53] : memref<8x2x128xf32, #tpu.memory_space<vmem>>, vector<1x2x128xf32>
    %150 = vector.shape_cast %149 : vector<1x2x128xf32> to vector<2x128xf32>
    %cst_54 = arith.constant dense<0.000000e+00> : vector<2x128xf32>
    %151 = tpu.matmul %134, %3, %cst_54 {dimension_numbers = #tpu.dot_dimension_numbers<[1], [0], [0], [1], [0, 0, 1, 1], [], []>} : vector<2x32xf32>, vector<32x128xf32>, vector<2x128xf32> -> vector<2x128xf32>
    %152 = arith.addf %150, %151 : vector<2x128xf32>
    %cst_55 = arith.constant 0.000000e+00 : f32
    %153 = vector.broadcast %cst_55 : f32 to vector<2x128xf32>
    %154 = arith.subf %153, %152 : vector<2x128xf32>
    %155 = math.exp %154 : vector<2x128xf32>
    %cst_56 = arith.constant 1.000000e+00 : f32
    %156 = vector.broadcast %cst_56 : f32 to vector<2x128xf32>
    %157 = arith.addf %156, %155 : vector<2x128xf32>
    %cst_57 = arith.constant 1.000000e+00 : f32
    %158 = vector.broadcast %cst_57 : f32 to vector<2x128xf32>
    %159 = arith.divf %158, %157 : vector<2x128xf32>
    %160 = math.tanh %152 : vector<2x128xf32>
    %161 = vector.extract_strided_slice %159 {offsets = [0, 0], sizes = [2, 32], strides = [1, 1]} : vector<2x128xf32> to vector<2x32xf32>
    %162 = vector.extract_strided_slice %159 {offsets = [0, 32], sizes = [2, 32], strides = [1, 1]} : vector<2x128xf32> to vector<2x32xf32>
    %163 = vector.extract_strided_slice %160 {offsets = [0, 64], sizes = [2, 32], strides = [1, 1]} : vector<2x128xf32> to vector<2x32xf32>
    %164 = vector.extract_strided_slice %159 {offsets = [0, 96], sizes = [2, 32], strides = [1, 1]} : vector<2x128xf32> to vector<2x32xf32>
    %165 = arith.mulf %162, %132 : vector<2x32xf32>
    %166 = arith.mulf %161, %163 : vector<2x32xf32>
    %167 = arith.addf %165, %166 : vector<2x32xf32>
    %168 = math.tanh %167 : vector<2x32xf32>
    %169 = arith.mulf %164, %168 : vector<2x32xf32>
    %170 = vector.extract_strided_slice %169 {offsets = [0, 0], sizes = [2, 16], strides = [1, 1]} : vector<2x32xf32> to vector<2x16xf32>
    %171 = arith.index_cast %147 : i32 to index
    %c0_58 = arith.constant 0 : index
    %c0_59 = arith.constant 0 : index
    %172 = vector.load %arg5[%171, %c0_58, %c0_59] : memref<8x2x32xf32, #tpu.memory_space<vmem>>, vector<1x2x16xf32>
    %173 = vector.shape_cast %172 : vector<1x2x16xf32> to vector<2x16xf32>
    %174 = vector.shape_cast %170 : vector<2x16xf32> to vector<1x2x16xf32>
    tpu.vector_store %arg5[%171, %c0_58, %c0_59], %174 {strides = array<i32>} : memref<8x2x32xf32, #tpu.memory_space<vmem>>, vector<1x2x16xf32>,
    %175 = vector.extract_strided_slice %169 {offsets = [0, 16], sizes = [2, 16], strides = [1, 1]} : vector<2x32xf32> to vector<2x16xf32>
    %c7_i32_60 = arith.constant 7 : i32
    %176 = arith.subi %c7_i32_60, %147 : i32
    %177 = arith.index_cast %176 : i32 to index
    %c0_61 = arith.constant 0 : index
    %c16_62 = arith.constant 16 : index
    %178 = vector.load %arg5[%177, %c0_61, %c16_62] : memref<8x2x32xf32, #tpu.memory_space<vmem>>, vector<1x2x16xf32>
    %179 = vector.shape_cast %178 : vector<1x2x16xf32> to vector<2x16xf32>
    %180 = vector.shape_cast %175 : vector<2x16xf32> to vector<1x2x16xf32>
    tpu.vector_store %arg5[%177, %c0_61, %c16_62], %180 {strides = array<i32>} : memref<8x2x32xf32, #tpu.memory_space<vmem>>, vector<1x2x16xf32>,
    %c5_i32 = arith.constant 5 : i32
    %c8_i32_63 = arith.constant 8 : i32
    %181 = arith.muli %arg0, %c8_i32_63 : i32
    %182 = arith.addi %181, %c5_i32 : i32
    %183 = arith.index_cast %c5_i32 : i32 to index
    %c0_64 = arith.constant 0 : index
    %c0_65 = arith.constant 0 : index
    %184 = vector.load %arg1[%183, %c0_64, %c0_65] : memref<8x2x128xf32, #tpu.memory_space<vmem>>, vector<1x2x128xf32>
    %185 = vector.shape_cast %184 : vector<1x2x128xf32> to vector<2x128xf32>
    %cst_66 = arith.constant dense<0.000000e+00> : vector<2x128xf32>
    %186 = tpu.matmul %169, %3, %cst_66 {dimension_numbers = #tpu.dot_dimension_numbers<[1], [0], [0], [1], [0, 0, 1, 1], [], []>} : vector<2x32xf32>, vector<32x128xf32>, vector<2x128xf32> -> vector<2x128xf32>
    %187 = arith.addf %185, %186 : vector<2x128xf32>
    %cst_67 = arith.constant 0.000000e+00 : f32
    %188 = vector.broadcast %cst_67 : f32 to vector<2x128xf32>
    %189 = arith.subf %188, %187 : vector<2x128xf32>
    %190 = math.exp %189 : vector<2x128xf32>
    %cst_68 = arith.constant 1.000000e+00 : f32
    %191 = vector.broadcast %cst_68 : f32 to vector<2x128xf32>
    %192 = arith.addf %191, %190 : vector<2x128xf32>
    %cst_69 = arith.constant 1.000000e+00 : f32
    %193 = vector.broadcast %cst_69 : f32 to vector<2x128xf32>
    %194 = arith.divf %193, %192 : vector<2x128xf32>
    %195 = math.tanh %187 : vector<2x128xf32>
    %196 = vector.extract_strided_slice %194 {offsets = [0, 0], sizes = [2, 32], strides = [1, 1]} : vector<2x128xf32> to vector<2x32xf32>
    %197 = vector.extract_strided_slice %194 {offsets = [0, 32], sizes = [2, 32], strides = [1, 1]} : vector<2x128xf32> to vector<2x32xf32>
    %198 = vector.extract_strided_slice %195 {offsets = [0, 64], sizes = [2, 32], strides = [1, 1]} : vector<2x128xf32> to vector<2x32xf32>
    %199 = vector.extract_strided_slice %194 {offsets = [0, 96], sizes = [2, 32], strides = [1, 1]} : vector<2x128xf32> to vector<2x32xf32>
    %200 = arith.mulf %197, %167 : vector<2x32xf32>
    %201 = arith.mulf %196, %198 : vector<2x32xf32>
    %202 = arith.addf %200, %201 : vector<2x32xf32>
    %203 = math.tanh %202 : vector<2x32xf32>
    %204 = arith.mulf %199, %203 : vector<2x32xf32>
    %205 = vector.extract_strided_slice %204 {offsets = [0, 0], sizes = [2, 16], strides = [1, 1]} : vector<2x32xf32> to vector<2x16xf32>
    %206 = arith.index_cast %182 : i32 to index
    %c0_70 = arith.constant 0 : index
    %c0_71 = arith.constant 0 : index
    %207 = vector.load %arg5[%206, %c0_70, %c0_71] : memref<8x2x32xf32, #tpu.memory_space<vmem>>, vector<1x2x16xf32>
    %208 = vector.shape_cast %207 : vector<1x2x16xf32> to vector<2x16xf32>
    %209 = vector.shape_cast %205 : vector<2x16xf32> to vector<1x2x16xf32>
    tpu.vector_store %arg5[%206, %c0_70, %c0_71], %209 {strides = array<i32>} : memref<8x2x32xf32, #tpu.memory_space<vmem>>, vector<1x2x16xf32>,
    %210 = vector.extract_strided_slice %204 {offsets = [0, 16], sizes = [2, 16], strides = [1, 1]} : vector<2x32xf32> to vector<2x16xf32>
    %c7_i32_72 = arith.constant 7 : i32
    %211 = arith.subi %c7_i32_72, %182 : i32
    %212 = arith.index_cast %211 : i32 to index
    %c0_73 = arith.constant 0 : index
    %c16_74 = arith.constant 16 : index
    %213 = vector.load %arg5[%212, %c0_73, %c16_74] : memref<8x2x32xf32, #tpu.memory_space<vmem>>, vector<1x2x16xf32>
    %214 = vector.shape_cast %213 : vector<1x2x16xf32> to vector<2x16xf32>
    %215 = vector.shape_cast %210 : vector<2x16xf32> to vector<1x2x16xf32>
    tpu.vector_store %arg5[%212, %c0_73, %c16_74], %215 {strides = array<i32>} : memref<8x2x32xf32, #tpu.memory_space<vmem>>, vector<1x2x16xf32>,
    %c6_i32 = arith.constant 6 : i32
    %c8_i32_75 = arith.constant 8 : i32
    %216 = arith.muli %arg0, %c8_i32_75 : i32
    %217 = arith.addi %216, %c6_i32 : i32
    %218 = arith.index_cast %c6_i32 : i32 to index
    %c0_76 = arith.constant 0 : index
    %c0_77 = arith.constant 0 : index
    %219 = vector.load %arg1[%218, %c0_76, %c0_77] : memref<8x2x128xf32, #tpu.memory_space<vmem>>, vector<1x2x128xf32>
    %220 = vector.shape_cast %219 : vector<1x2x128xf32> to vector<2x128xf32>
    %cst_78 = arith.constant dense<0.000000e+00> : vector<2x128xf32>
    %221 = tpu.matmul %204, %3, %cst_78 {dimension_numbers = #tpu.dot_dimension_numbers<[1], [0], [0], [1], [0, 0, 1, 1], [], []>} : vector<2x32xf32>, vector<32x128xf32>, vector<2x128xf32> -> vector<2x128xf32>
    %222 = arith.addf %220, %221 : vector<2x128xf32>
    %cst_79 = arith.constant 0.000000e+00 : f32
    %223 = vector.broadcast %cst_79 : f32 to vector<2x128xf32>
    %224 = arith.subf %223, %222 : vector<2x128xf32>
    %225 = math.exp %224 : vector<2x128xf32>
    %cst_80 = arith.constant 1.000000e+00 : f32
    %226 = vector.broadcast %cst_80 : f32 to vector<2x128xf32>
    %227 = arith.addf %226, %225 : vector<2x128xf32>
    %cst_81 = arith.constant 1.000000e+00 : f32
    %228 = vector.broadcast %cst_81 : f32 to vector<2x128xf32>
    %229 = arith.divf %228, %227 : vector<2x128xf32>
    %230 = math.tanh %222 : vector<2x128xf32>
    %231 = vector.extract_strided_slice %229 {offsets = [0, 0], sizes = [2, 32], strides = [1, 1]} : vector<2x128xf32> to vector<2x32xf32>
    %232 = vector.extract_strided_slice %229 {offsets = [0, 32], sizes = [2, 32], strides = [1, 1]} : vector<2x128xf32> to vector<2x32xf32>
    %233 = vector.extract_strided_slice %230 {offsets = [0, 64], sizes = [2, 32], strides = [1, 1]} : vector<2x128xf32> to vector<2x32xf32>
    %234 = vector.extract_strided_slice %229 {offsets = [0, 96], sizes = [2, 32], strides = [1, 1]} : vector<2x128xf32> to vector<2x32xf32>
    %235 = arith.mulf %232, %202 : vector<2x32xf32>
    %236 = arith.mulf %231, %233 : vector<2x32xf32>
    %237 = arith.addf %235, %236 : vector<2x32xf32>
    %238 = math.tanh %237 : vector<2x32xf32>
    %239 = arith.mulf %234, %238 : vector<2x32xf32>
    %240 = vector.extract_strided_slice %239 {offsets = [0, 0], sizes = [2, 16], strides = [1, 1]} : vector<2x32xf32> to vector<2x16xf32>
    %241 = arith.index_cast %217 : i32 to index
    %c0_82 = arith.constant 0 : index
    %c0_83 = arith.constant 0 : index
    %242 = vector.load %arg5[%241, %c0_82, %c0_83] : memref<8x2x32xf32, #tpu.memory_space<vmem>>, vector<1x2x16xf32>
    %243 = vector.shape_cast %242 : vector<1x2x16xf32> to vector<2x16xf32>
    %244 = vector.shape_cast %240 : vector<2x16xf32> to vector<1x2x16xf32>
    tpu.vector_store %arg5[%241, %c0_82, %c0_83], %244 {strides = array<i32>} : memref<8x2x32xf32, #tpu.memory_space<vmem>>, vector<1x2x16xf32>,
    %245 = vector.extract_strided_slice %239 {offsets = [0, 16], sizes = [2, 16], strides = [1, 1]} : vector<2x32xf32> to vector<2x16xf32>
    %c7_i32_84 = arith.constant 7 : i32
    %246 = arith.subi %c7_i32_84, %217 : i32
    %247 = arith.index_cast %246 : i32 to index
    %c0_85 = arith.constant 0 : index
    %c16_86 = arith.constant 16 : index
    %248 = vector.load %arg5[%247, %c0_85, %c16_86] : memref<8x2x32xf32, #tpu.memory_space<vmem>>, vector<1x2x16xf32>
    %249 = vector.shape_cast %248 : vector<1x2x16xf32> to vector<2x16xf32>
    %250 = vector.shape_cast %245 : vector<2x16xf32> to vector<1x2x16xf32>
    tpu.vector_store %arg5[%247, %c0_85, %c16_86], %250 {strides = array<i32>} : memref<8x2x32xf32, #tpu.memory_space<vmem>>, vector<1x2x16xf32>,
    %c7_i32_87 = arith.constant 7 : i32
    %c8_i32_88 = arith.constant 8 : i32
    %251 = arith.muli %arg0, %c8_i32_88 : i32
    %252 = arith.addi %251, %c7_i32_87 : i32
    %253 = arith.index_cast %c7_i32_87 : i32 to index
    %c0_89 = arith.constant 0 : index
    %c0_90 = arith.constant 0 : index
    %254 = vector.load %arg1[%253, %c0_89, %c0_90] : memref<8x2x128xf32, #tpu.memory_space<vmem>>, vector<1x2x128xf32>
    %255 = vector.shape_cast %254 : vector<1x2x128xf32> to vector<2x128xf32>
    %cst_91 = arith.constant dense<0.000000e+00> : vector<2x128xf32>
    %256 = tpu.matmul %239, %3, %cst_91 {dimension_numbers = #tpu.dot_dimension_numbers<[1], [0], [0], [1], [0, 0, 1, 1], [], []>} : vector<2x32xf32>, vector<32x128xf32>, vector<2x128xf32> -> vector<2x128xf32>
    %257 = arith.addf %255, %256 : vector<2x128xf32>
    %cst_92 = arith.constant 0.000000e+00 : f32
    %258 = vector.broadcast %cst_92 : f32 to vector<2x128xf32>
    %259 = arith.subf %258, %257 : vector<2x128xf32>
    %260 = math.exp %259 : vector<2x128xf32>
    %cst_93 = arith.constant 1.000000e+00 : f32
    %261 = vector.broadcast %cst_93 : f32 to vector<2x128xf32>
    %262 = arith.addf %261, %260 : vector<2x128xf32>
    %cst_94 = arith.constant 1.000000e+00 : f32
    %263 = vector.broadcast %cst_94 : f32 to vector<2x128xf32>
    %264 = arith.divf %263, %262 : vector<2x128xf32>
    %265 = math.tanh %257 : vector<2x128xf32>
    %266 = vector.extract_strided_slice %264 {offsets = [0, 0], sizes = [2, 32], strides = [1, 1]} : vector<2x128xf32> to vector<2x32xf32>
    %267 = vector.extract_strided_slice %264 {offsets = [0, 32], sizes = [2, 32], strides = [1, 1]} : vector<2x128xf32> to vector<2x32xf32>
    %268 = vector.extract_strided_slice %265 {offsets = [0, 64], sizes = [2, 32], strides = [1, 1]} : vector<2x128xf32> to vector<2x32xf32>
    %269 = vector.extract_strided_slice %264 {offsets = [0, 96], sizes = [2, 32], strides = [1, 1]} : vector<2x128xf32> to vector<2x32xf32>
    %270 = arith.mulf %267, %237 : vector<2x32xf32>
    %271 = arith.mulf %266, %268 : vector<2x32xf32>
    %272 = arith.addf %270, %271 : vector<2x32xf32>
    %273 = math.tanh %272 : vector<2x32xf32>
    %274 = arith.mulf %269, %273 : vector<2x32xf32>
    %275 = vector.extract_strided_slice %274 {offsets = [0, 0], sizes = [2, 16], strides = [1, 1]} : vector<2x32xf32> to vector<2x16xf32>
    %276 = arith.index_cast %252 : i32 to index
    %c0_95 = arith.constant 0 : index
    %c0_96 = arith.constant 0 : index
    %277 = vector.load %arg5[%276, %c0_95, %c0_96] : memref<8x2x32xf32, #tpu.memory_space<vmem>>, vector<1x2x16xf32>
    %278 = vector.shape_cast %277 : vector<1x2x16xf32> to vector<2x16xf32>
    %279 = vector.shape_cast %275 : vector<2x16xf32> to vector<1x2x16xf32>
    tpu.vector_store %arg5[%276, %c0_95, %c0_96], %279 {strides = array<i32>} : memref<8x2x32xf32, #tpu.memory_space<vmem>>, vector<1x2x16xf32>,
    %280 = vector.extract_strided_slice %274 {offsets = [0, 16], sizes = [2, 16], strides = [1, 1]} : vector<2x32xf32> to vector<2x16xf32>
    %c7_i32_97 = arith.constant 7 : i32
    %281 = arith.subi %c7_i32_97, %252 : i32
    %282 = arith.index_cast %281 : i32 to index
    %c0_98 = arith.constant 0 : index
    %c16_99 = arith.constant 16 : index
    %283 = vector.load %arg5[%282, %c0_98, %c16_99] : memref<8x2x32xf32, #tpu.memory_space<vmem>>, vector<1x2x16xf32>
    %284 = vector.shape_cast %283 : vector<1x2x16xf32> to vector<2x16xf32>
    %285 = vector.shape_cast %280 : vector<2x16xf32> to vector<1x2x16xf32>
    tpu.vector_store %arg5[%282, %c0_98, %c16_99], %285 {strides = array<i32>} : memref<8x2x32xf32, #tpu.memory_space<vmem>>, vector<1x2x16xf32>,
    %c8_i32_100 = arith.constant 8 : i32
    %c0_101 = arith.constant 0 : index
    %c0_102 = arith.constant 0 : index
    %286 = vector.load %arg6[%c0_101, %c0_102] : memref<2x32xf32, #tpu.memory_space<vmem>>, vector<2x32xf32>
    tpu.vector_store %arg6[%c0_101, %c0_102], %274 {strides = array<i32>} : memref<2x32xf32, #tpu.memory_space<vmem>>, vector<2x32xf32>,
    %c0_103 = arith.constant 0 : index
    %c0_104 = arith.constant 0 : index
    %287 = vector.load %arg7[%c0_103, %c0_104] : memref<2x32xf32, #tpu.memory_space<vmem>>, vector<2x32xf32>
    tpu.vector_store %arg7[%c0_103, %c0_104], %272 {strides = array<i32>} : memref<2x32xf32, #tpu.memory_space<vmem>>, vector<2x32xf32>,
    return
  }
  func.func @transform_0(%arg0: i32) -> (i32, i32, i32) {
    %c0_i32 = arith.constant 0 : i32
    %c0_i32_0 = arith.constant 0 : i32
    %c0_i32_1 = arith.constant 0 : i32
    return %arg0, %c0_i32, %c0_i32_0 : i32, i32, i32
  }
  func.func @transform_1(%arg0: i32) -> (i32, i32) {
    %c0_i32 = arith.constant 0 : i32
    %c0_i32_0 = arith.constant 0 : i32
    %c0_i32_1 = arith.constant 0 : i32
    return %c0_i32, %c0_i32_0 : i32, i32
  }
  func.func @transform_2(%arg0: i32) -> (i32, i32) {
    %c0_i32 = arith.constant 0 : i32
    %c0_i32_0 = arith.constant 0 : i32
    %c0_i32_1 = arith.constant 0 : i32
    return %c0_i32, %c0_i32_0 : i32, i32
  }
  func.func @transform_3(%arg0: i32) -> (i32, i32) {
    %c0_i32 = arith.constant 0 : i32
    %c0_i32_0 = arith.constant 0 : i32
    %c0_i32_1 = arith.constant 0 : i32
    return %c0_i32, %c0_i32_0 : i32, i32
  }
  func.func @transform_4(%arg0: i32) -> (i32, i32, i32) {
    %c0_i32 = arith.constant 0 : i32
    %c0_i32_0 = arith.constant 0 : i32
    %c0_i32_1 = arith.constant 0 : i32
    %c0_i32_2 = arith.constant 0 : i32
    return %c0_i32, %c0_i32_0, %c0_i32_1 : i32, i32, i32
  }
  func.func @transform_5(%arg0: i32) -> (i32, i32) {
    %c0_i32 = arith.constant 0 : i32
    %c0_i32_0 = arith.constant 0 : i32
    %c0_i32_1 = arith.constant 0 : i32
    return %c0_i32, %c0_i32_0 : i32, i32
  }
  func.func @transform_6(%arg0: i32) -> (i32, i32) {
    %c0_i32 = arith.constant 0 : i32
    %c0_i32_0 = arith.constant 0 : i32
    %c0_i32_1 = arith.constant 0 : i32
    return %c0_i32, %c0_i32_0 : i32, i32
  }
}

</mosaic_0001>

<llo_original>
// kernel: encoder_rnn_forward.2
$region0: #{encoder_rnn_forward.2}
  #allocation0 [shape = 'u32[]', space=smem, size = 0x4, offset = 0x4, fixed_abs, tag = 'smem constant byte address 0x4 - core index']
  #allocation1 [shape = 'u32[72,128]{1,0:T(1,128)}', space=vmem, size = 0x9000, scoped, tag = 'internal scratch']
  %s0 = inlined_call_operand.vmem [shape: f32[8,2,128], index: 0, kind: input, shape index: {}]
  %s1 = inlined_call_operand.vmem [shape: f32[32,128], index: 1, kind: input, shape index: {}]
  %s2 = inlined_call_operand.vmem [shape: f32[2,32], index: 2, kind: input, shape index: {}]
  %s3 = inlined_call_operand.vmem [shape: f32[2,32], index: 3, kind: input, shape index: {}]
  %s4 = inlined_call_operand.vmem [shape: f32[8,2,32], index: 4, kind: output, shape index: {0}]
  %s5 = inlined_call_operand.vmem [shape: f32[2,32], index: 5, kind: output, shape index: {1}]
  %s6 = inlined_call_operand.vmem [shape: f32[2,32], index: 6, kind: output, shape index: {2}]
  %7 = xla_tuple %s4, %s5, %s6
  %s8 = sld [smem:[#allocation0]]
  $region46: #{encoder_rnn_forward.2} parent=0
    _
  %s10 = ssub.s32 1, %s8
  %s11 = scalar_select 0, %s10, %s8
  // Predicated region
  $region2: #{encoder_rnn_forward.2} parent=0 // pred_check
    _
  $region3: #{encoder_rnn_forward.2} parent=0 // pred_check_branch
    %13 = sbr.rel (0) target = $region5
  $region4: #{encoder_rnn_forward.2} parent=0 // pred_region
    _
  $region5: #{encoder_rnn_forward.2} parent=0 // pred_fallthru
    _
  // Predicated region
  $region6: #{encoder_rnn_forward.2} parent=0 // pred_check
    _
  $region7: #{encoder_rnn_forward.2} parent=0 // pred_check_branch
    %15 = sbr.rel (0) target = $region9
  $region8: #{encoder_rnn_forward.2} parent=0 // pred_region
    _
  $region9: #{encoder_rnn_forward.2} parent=0 // pred_fallthru
    _
  // Predicated region
  $region10: #{encoder_rnn_forward.2} parent=0 // pred_check
    _
  $region11: #{encoder_rnn_forward.2} parent=0 // pred_check_branch
    %17 = sbr.rel (0) target = $region13
  $region12: #{encoder_rnn_forward.2} parent=0 // pred_region
    _
  $region13: #{encoder_rnn_forward.2} parent=0 // pred_fallthru
    _
  // Predicated region
  $region14: #{encoder_rnn_forward.2} parent=0 // pred_check
    _
  $region15: #{encoder_rnn_forward.2} parent=0 // pred_check_branch
    %19 = sbr.rel (0) target = $region17
  $region16: #{encoder_rnn_forward.2} parent=0 // pred_region
    _
  $region17: #{encoder_rnn_forward.2} parent=0 // pred_fallthru
    _
  %p20 = scmp.eq.s32.totalorder 0, 0
  // Predicated region
  $region18: #{encoder_rnn_forward.2} parent=0 // pred_check
    %p21 = pneg %p20
  $region19: #{encoder_rnn_forward.2} parent=0 // pred_check_branch
    %23 = sbr.rel (%p21) target = $region21
  $region20: #{encoder_rnn_forward.2} parent=0 // pred_region
    %v24 = vld [vmem:[%s2] sm:$0x3]
    %vm25 = vcmask 254976
    %26 = vst.msk [vmem:[%s5] sm:$0x3] %vm25, %v24
    %v27 = vld [vmem:[%s3] sm:$0x3]
    %28 = vst.msk [vmem:[%s6] sm:$0x3] %vm25, %v27
  $region21: #{encoder_rnn_forward.2} parent=0 // pred_fallthru
    _
  %v29 = vld [vmem:[%s1] sm:$0xff]
  %v30 = vld [vmem:[%s1 + $0x8] sm:$0xff]
  %v31 = vld [vmem:[%s1 + $0x10] sm:$0xff]
  %v32 = vld [vmem:[%s1 + $0x18] sm:$0xff]
  %v33 = vld [vmem:[%s5] sm:$0x3]
  %v34 = vld [vmem:[%s6] sm:$0x3]
  %s35 = smul.u32 0, 8
  %v36 = vld [vmem:[%s0] sm:$0x3]
  %vm37 = vcmask 261120
  %v39 = vsel %vm37, %v33, 0
  %41 = vmatpush.msra.mxu0 0.0
  %42 = vmatpush.msra.mxu0 0.0
  %43 = vmatpush.msra.mxu0 0.0
  %44 = vmatpush.msra.mxu0 0.0
  %45 = vmatpush.msra.mxu0 0.0
  %46 = vmatpush.msra.mxu0 0.0
  %47 = vmatpush.msra.mxu0 0.0
  %48 = vmatpush.msra.mxu0 0.0
  %49 = vmatpush.msra.mxu0 0.0
  %50 = vmatpush.msra.mxu0 0.0
  %51 = vmatpush.msra.mxu0 0.0
  %52 = vmatpush.msra.mxu0 0.0
  %53 = vmatpush.msra.mxu0 %v32
  %54 = vmatpush.msra.mxu0 %v31
  %55 = vmatpush.msra.mxu0 %v30
  %56 = vmatpush.msra.mxu0 %v29
  %57 = vmatmul.f32.gmra.mxu0 %v39
  %v58 = vpop.f32.mrf.mxu0
  %v59 = vadd.f32 0.0, %v58
  %60 = vdwg.mxu0
  %v61 = vadd.f32 %v36, %v59
  %v62 = vsub.f32 0.0, %v61
  %v63 = vmul.f32 %v62, 1.442695
  %v64 = vpow.pop %v63
  %v65 = vadd.f32 %v64, 1.0
  %v66 = vrcp.pop %v65
  %v67 = vmul.f32 %v65, %v66
  %v68 = vsub.f32 1.0, %v67
  %v69 = vmul.f32 %v66, %v68
  %v70 = vadd.f32 %v66, %v69
  %vm71 = vweird.f32 %v65
  %vm72 = vweird.f32 %v66
  %vm73 = vmor %vm71, %vm72
  %v74 = vsel %vm73, %v66, %v70
  %v75 = vand.u32 2147483647, %v65
  %vm76 = vcmp.eq.f32.partialorder %v75, 8.507059e+37
  %v77 = vand.u32 %v65, 2147483648
  %v78 = vor.u32 1.1754944e-38, %v77
  %v79 = vsel %vm76, %v78, %v74
  %v80 = vmul.f32 1.0, %v79
  %v81 = vtanh.pop %v61
  %83 = vrot.lane.b32.xlu0 %v34, 32
  %v84 = vpop.permute.xlu0 %83
  %v86 = vmul.f32 %v80, %v84
  %88 = vrot.lane.b32.xlu0 %v81, 64
  %v89 = vpop.permute.xlu0 %88
  %v91 = vmul.f32 %v80, %v89
  %93 = vrot.lane.b32.xlu0 %v91, 32
  %v94 = vpop.permute.xlu0 %93
  %v96 = vadd.f32 %v86, %v94
  %v97 = vtanh.pop %v96
  %99 = vrot.lane.b32.xlu0 %v97, 64
  %v100 = vpop.permute.xlu0 %99
  %v102 = vmul.f32 %v80, %v100
  %104 = vrot.lane.b32.xlu0 %v102, 32
  %v105 = vpop.permute.xlu0 %104
  %s107 = smul.u32 %s35, 2
  %s108 = scalar_lea.vmem %s4, %s107
  %vm109 = vcmask 123904
  %110 = vst.msk [vmem:[%s108] sm:$0x3] %vm109, %v105
  %s111 = ssub.s32 7, %s35
  %s112 = smul.u32 %s111, 2
  %s113 = scalar_lea.vmem %s4, %s112
  %vm114 = vcmask 255104
  %115 = vst.msk [vmem:[%s113] sm:$0x3] %vm114, %v105
  %s116 = sadd.s32 %s35, 1
  %s117 = scalar_lea.vmem %s0, 2
  %v118 = vld [vmem:[%s117] sm:$0x3]
  %v119 = vsel %vm37, %v105, 0
  %121 = vmatpush.msra.mxu0 0.0
  %122 = vmatpush.msra.mxu0 0.0
  %123 = vmatpush.msra.mxu0 0.0
  %124 = vmatpush.msra.mxu0 0.0
  %125 = vmatpush.msra.mxu0 0.0
  %126 = vmatpush.msra.mxu0 0.0
  %127 = vmatpush.msra.mxu0 0.0
  %128 = vmatpush.msra.mxu0 0.0
  %129 = vmatpush.msra.mxu0 0.0
  %130 = vmatpush.msra.mxu0 0.0
  %131 = vmatpush.msra.mxu0 0.0
  %132 = vmatpush.msra.mxu0 0.0
  %133 = vmatpush.msra.mxu0 %v32
  %134 = vmatpush.msra.mxu0 %v31
  %135 = vmatpush.msra.mxu0 %v30
  %136 = vmatpush.msra.mxu0 %v29
  %137 = vmatmul.f32.gmra.mxu0 %v119
  %v138 = vpop.f32.mrf.mxu0
  %v139 = vadd.f32 0.0, %v138
  %140 = vdwg.mxu0
  %v141 = vadd.f32 %v118, %v139
  %v142 = vsub.f32 0.0, %v141
  %v143 = vmul.f32 %v142, 1.442695
  %v144 = vpow.pop %v143
  %v145 = vadd.f32 %v144, 1.0
  %v146 = vrcp.pop %v145
  %v147 = vmul.f32 %v145, %v146
  %v148 = vsub.f32 1.0, %v147
  %v149 = vmul.f32 %v146, %v148
  %v150 = vadd.f32 %v146, %v149
  %vm151 = vweird.f32 %v145
  %vm152 = vweird.f32 %v146
  %vm153 = vmor %vm151, %vm152
  %v154 = vsel %vm153, %v146, %v150
  %v155 = vand.u32 2147483647, %v145
  %vm156 = vcmp.eq.f32.partialorder %v155, 8.507059e+37
  %v157 = vand.u32 %v145, 2147483648
  %v158 = vor.u32 1.1754944e-38, %v157
  %v159 = vsel %vm156, %v158, %v154
  %v160 = vmul.f32 1.0, %v159
  %v161 = vtanh.pop %v141
  %v162 = vmul.f32 %v160, %v96
  %164 = vrot.lane.b32.xlu0 %v161, 64
  %v165 = vpop.permute.xlu0 %164
  %v167 = vmul.f32 %v160, %v165
  %169 = vrot.lane.b32.xlu0 %v167, 32
  %v170 = vpop.permute.xlu0 %169
  %v172 = vadd.f32 %v162, %v170
  %v173 = vtanh.pop %v172
  %175 = vrot.lane.b32.xlu0 %v173, 64
  %v176 = vpop.permute.xlu0 %175
  %v178 = vmul.f32 %v160, %v176
  %180 = vrot.lane.b32.xlu0 %v178, 32
  %v181 = vpop.permute.xlu0 %180
  %s183 = smul.u32 %s116, 2
  %s184 = scalar_lea.vmem %s4, %s183
  %185 = vst.msk [vmem:[%s184] sm:$0x3] %vm109, %v181
  %s186 = ssub.s32 6, %s35
  %s187 = smul.u32 %s186, 2
  %s188 = scalar_lea.vmem %s4, %s187
  %189 = vst.msk [vmem:[%s188] sm:$0x3] %vm114, %v181
  %s190 = sadd.s32 %s35, 2
  %s191 = scalar_lea.vmem %s0, 4
  %v192 = vld [vmem:[%s191] sm:$0x3]
  %v193 = vsel %vm37, %v181, 0
  %195 = vmatpush.msra.mxu0 0.0
  %196 = vmatpush.msra.mxu0 0.0
  %197 = vmatpush.msra.mxu0 0.0
  %198 = vmatpush.msra.mxu0 0.0
  %199 = vmatpush.msra.mxu0 0.0
  %200 = vmatpush.msra.mxu0 0.0
  %201 = vmatpush.msra.mxu0 0.0
  %202 = vmatpush.msra.mxu0 0.0
  %203 = vmatpush.msra.mxu0 0.0
  %204 = vmatpush.msra.mxu0 0.0
  %205 = vmatpush.msra.mxu0 0.0
  %206 = vmatpush.msra.mxu0 0.0
  %207 = vmatpush.msra.mxu0 %v32
  %208 = vmatpush.msra.mxu0 %v31
  %209 = vmatpush.msra.mxu0 %v30
  %210 = vmatpush.msra.mxu0 %v29
  %211 = vmatmul.f32.gmra.mxu0 %v193
  %v212 = vpop.f32.mrf.mxu0
  %v213 = vadd.f32 0.0, %v212
  %214 = vdwg.mxu0
  %v215 = vadd.f32 %v192, %v213
  %v216 = vsub.f32 0.0, %v215
  %v217 = vmul.f32 %v216, 1.442695
  %v218 = vpow.pop %v217
  %v219 = vadd.f32 %v218, 1.0
  %v220 = vrcp.pop %v219
  %v221 = vmul.f32 %v219, %v220
  %v222 = vsub.f32 1.0, %v221
  %v223 = vmul.f32 %v220, %v222
  %v224 = vadd.f32 %v220, %v223
  %vm225 = vweird.f32 %v219
  %vm226 = vweird.f32 %v220
  %vm227 = vmor %vm225, %vm226
  %v228 = vsel %vm227, %v220, %v224
  %v229 = vand.u32 2147483647, %v219
  %vm230 = vcmp.eq.f32.partialorder %v229, 8.507059e+37
  %v231 = vand.u32 %v219, 2147483648
  %v232 = vor.u32 1.1754944e-38, %v231
  %v233 = vsel %vm230, %v232, %v228
  %v234 = vmul.f32 1.0, %v233
  %v235 = vtanh.pop %v215
  %v236 = vmul.f32 %v234, %v172
  %238 = vrot.lane.b32.xlu0 %v235, 64
  %v239 = vpop.permute.xlu0 %238
  %v241 = vmul.f32 %v234, %v239
  %243 = vrot.lane.b32.xlu0 %v241, 32
  %v244 = vpop.permute.xlu0 %243
  %v246 = vadd.f32 %v236, %v244
  %v247 = vtanh.pop %v246
  %249 = vrot.lane.b32.xlu0 %v247, 64
  %v250 = vpop.permute.xlu0 %249
  %v252 = vmul.f32 %v234, %v250
  %254 = vrot.lane.b32.xlu0 %v252, 32
  %v255 = vpop.permute.xlu0 %254
  %s257 = smul.u32 %s190, 2
  %s258 = scalar_lea.vmem %s4, %s257
  %259 = vst.msk [vmem:[%s258] sm:$0x3] %vm109, %v255
  %s260 = ssub.s32 5, %s35
  %s261 = smul.u32 %s260, 2
  %s262 = scalar_lea.vmem %s4, %s261
  %263 = vst.msk [vmem:[%s262] sm:$0x3] %vm114, %v255
  %s264 = sadd.s32 %s35, 3
  %s265 = scalar_lea.vmem %s0, 6
  %v266 = vld [vmem:[%s265] sm:$0x3]
  %v267 = vsel %vm37, %v255, 0
  %269 = vmatpush.msra.mxu0 0.0
  %270 = vmatpush.msra.mxu0 0.0
  %271 = vmatpush.msra.mxu0 0.0
  %272 = vmatpush.msra.mxu0 0.0
  %273 = vmatpush.msra.mxu0 0.0
  %274 = vmatpush.msra.mxu0 0.0
  %275 = vmatpush.msra.mxu0 0.0
  %276 = vmatpush.msra.mxu0 0.0
  %277 = vmatpush.msra.mxu0 0.0
  %278 = vmatpush.msra.mxu0 0.0
  %279 = vmatpush.msra.mxu0 0.0
  %280 = vmatpush.msra.mxu0 0.0
  %281 = vmatpush.msra.mxu0 %v32
  %282 = vmatpush.msra.mxu0 %v31
  %283 = vmatpush.msra.mxu0 %v30
  %284 = vmatpush.msra.mxu0 %v29
  %285 = vmatmul.f32.gmra.mxu0 %v267
  %v286 = vpop.f32.mrf.mxu0
  %v287 = vadd.f32 0.0, %v286
  %288 = vdwg.mxu0
  %v289 = vadd.f32 %v266, %v287
  %v290 = vsub.f32 0.0, %v289
  %v291 = vmul.f32 %v290, 1.442695
  %v292 = vpow.pop %v291
  %v293 = vadd.f32 %v292, 1.0
  %v294 = vrcp.pop %v293
  %v295 = vmul.f32 %v293, %v294
  %v296 = vsub.f32 1.0, %v295
  %v297 = vmul.f32 %v294, %v296
  %v298 = vadd.f32 %v294, %v297
  %vm299 = vweird.f32 %v293
  %vm300 = vweird.f32 %v294
  %vm301 = vmor %vm299, %vm300
  %v302 = vsel %vm301, %v294, %v298
  %v303 = vand.u32 2147483647, %v293
  %vm304 = vcmp.eq.f32.partialorder %v303, 8.507059e+37
  %v305 = vand.u32 %v293, 2147483648
  %v306 = vor.u32 1.1754944e-38, %v305
  %v307 = vsel %vm304, %v306, %v302
  %v308 = vmul.f32 1.0, %v307
  %v309 = vtanh.pop %v289
  %v310 = vmul.f32 %v308, %v246
  %312 = vrot.lane.b32.xlu0 %v309, 64
  %v313 = vpop.permute.xlu0 %312
  %v315 = vmul.f32 %v308, %v313
  %317 = vrot.lane.b32.xlu0 %v315, 32
  %v318 = vpop.permute.xlu0 %317
  %v320 = vadd.f32 %v310, %v318
  %v321 = vtanh.pop %v320
  %323 = vrot.lane.b32.xlu0 %v321, 64
  %v324 = vpop.permute.xlu0 %323
  %v326 = vmul.f32 %v308, %v324
  %328 = vrot.lane.b32.xlu0 %v326, 32
  %v329 = vpop.permute.xlu0 %328
  %s331 = smul.u32 %s264, 2
  %s332 = scalar_lea.vmem %s4, %s331
  %333 = vst.msk [vmem:[%s332] sm:$0x3] %vm109, %v329
  %s334 = ssub.s32 4, %s35
  %s335 = smul.u32 %s334, 2
  %s336 = scalar_lea.vmem %s4, %s335
  %337 = vst.msk [vmem:[%s336] sm:$0x3] %vm114, %v329
  %s338 = sadd.s32 %s35, 4
  %s339 = scalar_lea.vmem %s0, 8
  %v340 = vld [vmem:[%s339] sm:$0x3]
  %v341 = vsel %vm37, %v329, 0
  %343 = vmatpush.msra.mxu0 0.0
  %344 = vmatpush.msra.mxu0 0.0
  %345 = vmatpush.msra.mxu0 0.0
  %346 = vmatpush.msra.mxu0 0.0
  %347 = vmatpush.msra.mxu0 0.0
  %348 = vmatpush.msra.mxu0 0.0
  %349 = vmatpush.msra.mxu0 0.0
  %350 = vmatpush.msra.mxu0 0.0
  %351 = vmatpush.msra.mxu0 0.0
  %352 = vmatpush.msra.mxu0 0.0
  %353 = vmatpush.msra.mxu0 0.0
  %354 = vmatpush.msra.mxu0 0.0
  %355 = vmatpush.msra.mxu0 %v32
  %356 = vmatpush.msra.mxu0 %v31
  %357 = vmatpush.msra.mxu0 %v30
  %358 = vmatpush.msra.mxu0 %v29
  %359 = vmatmul.f32.gmra.mxu0 %v341
  %v360 = vpop.f32.mrf.mxu0
  %v361 = vadd.f32 0.0, %v360
  %362 = vdwg.mxu0
  %v363 = vadd.f32 %v340, %v361
  %v364 = vsub.f32 0.0, %v363
  %v365 = vmul.f32 %v364, 1.442695
  %v366 = vpow.pop %v365
  %v367 = vadd.f32 %v366, 1.0
  %v368 = vrcp.pop %v367
  %v369 = vmul.f32 %v367, %v368
  %v370 = vsub.f32 1.0, %v369
  %v371 = vmul.f32 %v368, %v370
  %v372 = vadd.f32 %v368, %v371
  %vm373 = vweird.f32 %v367
  %vm374 = vweird.f32 %v368
  %vm375 = vmor %vm373, %vm374
  %v376 = vsel %vm375, %v368, %v372
  %v377 = vand.u32 2147483647, %v367
  %vm378 = vcmp.eq.f32.partialorder %v377, 8.507059e+37
  %v379 = vand.u32 %v367, 2147483648
  %v380 = vor.u32 1.1754944e-38, %v379
  %v381 = vsel %vm378, %v380, %v376
  %v382 = vmul.f32 1.0, %v381
  %v383 = vtanh.pop %v363
  %v384 = vmul.f32 %v382, %v320
  %386 = vrot.lane.b32.xlu0 %v383, 64
  %v387 = vpop.permute.xlu0 %386
  %v389 = vmul.f32 %v382, %v387
  %391 = vrot.lane.b32.xlu0 %v389, 32
  %v392 = vpop.permute.xlu0 %391
  %v394 = vadd.f32 %v384, %v392
  %v395 = vtanh.pop %v394
  %397 = vrot.lane.b32.xlu0 %v395, 64
  %v398 = vpop.permute.xlu0 %397
  %v400 = vmul.f32 %v382, %v398
  %402 = vrot.lane.b32.xlu0 %v400, 32
  %v403 = vpop.permute.xlu0 %402
  %s405 = smul.u32 %s338, 2
  %s406 = scalar_lea.vmem %s4, %s405
  %407 = vst.msk [vmem:[%s406] sm:$0x3] %vm109, %v403
  %s408 = ssub.s32 3, %s35
  %s409 = smul.u32 %s408, 2
  %s410 = scalar_lea.vmem %s4, %s409
  %411 = vst.msk [vmem:[%s410] sm:$0x3] %vm114, %v403
  %s412 = sadd.s32 %s35, 5
  %s413 = scalar_lea.vmem %s0, 10
  %v414 = vld [vmem:[%s413] sm:$0x3]
  %v415 = vsel %vm37, %v403, 0
  %417 = vmatpush.msra.mxu0 0.0
  %418 = vmatpush.msra.mxu0 0.0
  %419 = vmatpush.msra.mxu0 0.0
  %420 = vmatpush.msra.mxu0 0.0
  %421 = vmatpush.msra.mxu0 0.0
  %422 = vmatpush.msra.mxu0 0.0
  %423 = vmatpush.msra.mxu0 0.0
  %424 = vmatpush.msra.mxu0 0.0
  %425 = vmatpush.msra.mxu0 0.0
  %426 = vmatpush.msra.mxu0 0.0
  %427 = vmatpush.msra.mxu0 0.0
  %428 = vmatpush.msra.mxu0 0.0
  %429 = vmatpush.msra.mxu0 %v32
  %430 = vmatpush.msra.mxu0 %v31
  %431 = vmatpush.msra.mxu0 %v30
  %432 = vmatpush.msra.mxu0 %v29
  %433 = vmatmul.f32.gmra.mxu0 %v415
  %v434 = vpop.f32.mrf.mxu0
  %v435 = vadd.f32 0.0, %v434
  %436 = vdwg.mxu0
  %v437 = vadd.f32 %v414, %v435
  %v438 = vsub.f32 0.0, %v437
  %v439 = vmul.f32 %v438, 1.442695
  %v440 = vpow.pop %v439
  %v441 = vadd.f32 %v440, 1.0
  %v442 = vrcp.pop %v441
  %v443 = vmul.f32 %v441, %v442
  %v444 = vsub.f32 1.0, %v443
  %v445 = vmul.f32 %v442, %v444
  %v446 = vadd.f32 %v442, %v445
  %vm447 = vweird.f32 %v441
  %vm448 = vweird.f32 %v442
  %vm449 = vmor %vm447, %vm448
  %v450 = vsel %vm449, %v442, %v446
  %v451 = vand.u32 2147483647, %v441
  %vm452 = vcmp.eq.f32.partialorder %v451, 8.507059e+37
  %v453 = vand.u32 %v441, 2147483648
  %v454 = vor.u32 1.1754944e-38, %v453
  %v455 = vsel %vm452, %v454, %v450
  %v456 = vmul.f32 1.0, %v455
  %v457 = vtanh.pop %v437
  %v458 = vmul.f32 %v456, %v394
  %460 = vrot.lane.b32.xlu0 %v457, 64
  %v461 = vpop.permute.xlu0 %460
  %v463 = vmul.f32 %v456, %v461
  %465 = vrot.lane.b32.xlu0 %v463, 32
  %v466 = vpop.permute.xlu0 %465
  %v468 = vadd.f32 %v458, %v466
  %v469 = vtanh.pop %v468
  %471 = vrot.lane.b32.xlu0 %v469, 64
  %v472 = vpop.permute.xlu0 %471
  %v474 = vmul.f32 %v456, %v472
  %476 = vrot.lane.b32.xlu0 %v474, 32
  %v477 = vpop.permute.xlu0 %476
  %s479 = smul.u32 %s412, 2
  %s480 = scalar_lea.vmem %s4, %s479
  %481 = vst.msk [vmem:[%s480] sm:$0x3] %vm109, %v477
  %s482 = ssub.s32 2, %s35
  %s483 = smul.u32 %s482, 2
  %s484 = scalar_lea.vmem %s4, %s483
  %485 = vst.msk [vmem:[%s484] sm:$0x3] %vm114, %v477
  %s486 = sadd.s32 %s35, 6
  %s487 = scalar_lea.vmem %s0, 12
  %v488 = vld [vmem:[%s487] sm:$0x3]
  %v489 = vsel %vm37, %v477, 0
  %491 = vmatpush.msra.mxu0 0.0
  %492 = vmatpush.msra.mxu0 0.0
  %493 = vmatpush.msra.mxu0 0.0
  %494 = vmatpush.msra.mxu0 0.0
  %495 = vmatpush.msra.mxu0 0.0
  %496 = vmatpush.msra.mxu0 0.0
  %497 = vmatpush.msra.mxu0 0.0
  %498 = vmatpush.msra.mxu0 0.0
  %499 = vmatpush.msra.mxu0 0.0
  %500 = vmatpush.msra.mxu0 0.0
  %501 = vmatpush.msra.mxu0 0.0
  %502 = vmatpush.msra.mxu0 0.0
  %503 = vmatpush.msra.mxu0 %v32
  %504 = vmatpush.msra.mxu0 %v31
  %505 = vmatpush.msra.mxu0 %v30
  %506 = vmatpush.msra.mxu0 %v29
  %507 = vmatmul.f32.gmra.mxu0 %v489
  %v508 = vpop.f32.mrf.mxu0
  %v509 = vadd.f32 0.0, %v508
  %510 = vdwg.mxu0
  %v511 = vadd.f32 %v488, %v509
  %v512 = vsub.f32 0.0, %v511
  %v513 = vmul.f32 %v512, 1.442695
  %v514 = vpow.pop %v513
  %v515 = vadd.f32 %v514, 1.0
  %v516 = vrcp.pop %v515
  %v517 = vmul.f32 %v515, %v516
  %v518 = vsub.f32 1.0, %v517
  %v519 = vmul.f32 %v516, %v518
  %v520 = vadd.f32 %v516, %v519
  %vm521 = vweird.f32 %v515
  %vm522 = vweird.f32 %v516
  %vm523 = vmor %vm521, %vm522
  %v524 = vsel %vm523, %v516, %v520
  %v525 = vand.u32 2147483647, %v515
  %vm526 = vcmp.eq.f32.partialorder %v525, 8.507059e+37
  %v527 = vand.u32 %v515, 2147483648
  %v528 = vor.u32 1.1754944e-38, %v527
  %v529 = vsel %vm526, %v528, %v524
  %v530 = vmul.f32 1.0, %v529
  %v531 = vtanh.pop %v511
  %v532 = vmul.f32 %v530, %v468
  %534 = vrot.lane.b32.xlu0 %v531, 64
  %v535 = vpop.permute.xlu0 %534
  %v537 = vmul.f32 %v530, %v535
  %539 = vrot.lane.b32.xlu0 %v537, 32
  %v540 = vpop.permute.xlu0 %539
  %v542 = vadd.f32 %v532, %v540
  %v543 = vtanh.pop %v542
  %545 = vrot.lane.b32.xlu0 %v543, 64
  %v546 = vpop.permute.xlu0 %545
  %v548 = vmul.f32 %v530, %v546
  %550 = vrot.lane.b32.xlu0 %v548, 32
  %v551 = vpop.permute.xlu0 %550
  %s553 = smul.u32 %s486, 2
  %s554 = scalar_lea.vmem %s4, %s553
  %555 = vst.msk [vmem:[%s554] sm:$0x3] %vm109, %v551
  %s556 = ssub.s32 1, %s35
  %s557 = smul.u32 %s556, 2
  %s558 = scalar_lea.vmem %s4, %s557
  %559 = vst.msk [vmem:[%s558] sm:$0x3] %vm114, %v551
  %s560 = sadd.s32 %s35, 7
  %s561 = scalar_lea.vmem %s0, 14
  %v562 = vld [vmem:[%s561] sm:$0x3]
  %v563 = vsel %vm37, %v551, 0
  %565 = vmatpush.msra.mxu0 0.0
  %566 = vmatpush.msra.mxu0 0.0
  %567 = vmatpush.msra.mxu0 0.0
  %568 = vmatpush.msra.mxu0 0.0
  %569 = vmatpush.msra.mxu0 0.0
  %570 = vmatpush.msra.mxu0 0.0
  %571 = vmatpush.msra.mxu0 0.0
  %572 = vmatpush.msra.mxu0 0.0
  %573 = vmatpush.msra.mxu0 0.0
  %574 = vmatpush.msra.mxu0 0.0
  %575 = vmatpush.msra.mxu0 0.0
  %576 = vmatpush.msra.mxu0 0.0
  %577 = vmatpush.msra.mxu0 %v32
  %578 = vmatpush.msra.mxu0 %v31
  %579 = vmatpush.msra.mxu0 %v30
  %580 = vmatpush.msra.mxu0 %v29
  %581 = vmatmul.f32.gmra.mxu0 %v563
  %v582 = vpop.f32.mrf.mxu0
  %v583 = vadd.f32 0.0, %v582
  %584 = vdwg.mxu0
  %v585 = vadd.f32 %v562, %v583
  %v586 = vsub.f32 0.0, %v585
  %v587 = vmul.f32 %v586, 1.442695
  %v588 = vpow.pop %v587
  %v589 = vadd.f32 %v588, 1.0
  %v590 = vrcp.pop %v589
  %v591 = vmul.f32 %v589, %v590
  %v592 = vsub.f32 1.0, %v591
  %v593 = vmul.f32 %v590, %v592
  %v594 = vadd.f32 %v590, %v593
  %vm595 = vweird.f32 %v589
  %vm596 = vweird.f32 %v590
  %vm597 = vmor %vm595, %vm596
  %v598 = vsel %vm597, %v590, %v594
  %v599 = vand.u32 2147483647, %v589
  %vm600 = vcmp.eq.f32.partialorder %v599, 8.507059e+37
  %v601 = vand.u32 %v589, 2147483648
  %v602 = vor.u32 1.1754944e-38, %v601
  %v603 = vsel %vm600, %v602, %v598
  %v604 = vmul.f32 1.0, %v603
  %v605 = vtanh.pop %v585
  %v606 = vmul.f32 %v604, %v542
  %608 = vrot.lane.b32.xlu0 %v605, 64
  %v609 = vpop.permute.xlu0 %608
  %v611 = vmul.f32 %v604, %v609
  %613 = vrot.lane.b32.xlu0 %v611, 32
  %v614 = vpop.permute.xlu0 %613
  %v616 = vadd.f32 %v606, %v614
  %v617 = vtanh.pop %v616
  %619 = vrot.lane.b32.xlu0 %v617, 64
  %v620 = vpop.permute.xlu0 %619
  %v622 = vmul.f32 %v604, %v620
  %624 = vrot.lane.b32.xlu0 %v622, 32
  %v625 = vpop.permute.xlu0 %624
  %s627 = smul.u32 %s560, 2
  %s628 = scalar_lea.vmem %s4, %s627
  %629 = vst.msk [vmem:[%s628] sm:$0x3] %vm109, %v625
  %s630 = ssub.s32 0, %s35
  %s631 = smul.u32 %s630, 2
  %s632 = scalar_lea.vmem %s4, %s631
  %633 = vst.msk [vmem:[%s632] sm:$0x3] %vm114, %v625
  %vm634 = vcmask 254976
  %635 = vst.msk [vmem:[%s5] sm:$0x3] %vm634, %v625
  %637 = vrot.lane.b32.xlu0 %v616, 96
  %v638 = vpop.permute.xlu0 %637
  %640 = vst.msk [vmem:[%s6] sm:$0x3] %vm634, %v638
  // Predicated region
  $region22: #{encoder_rnn_forward.2} parent=0 // pred_check
    _
  $region23: #{encoder_rnn_forward.2} parent=0 // pred_check_branch
    %642 = sbr.rel (0) target = $region25
  $region24: #{encoder_rnn_forward.2} parent=0 // pred_region
    _
  $region25: #{encoder_rnn_forward.2} parent=0 // pred_fallthru
    _
  // Predicated region
  $region26: #{encoder_rnn_forward.2} parent=0 // pred_check
    _
  $region27: #{encoder_rnn_forward.2} parent=0 // pred_check_branch
    %644 = sbr.rel (0) target = $region29
  $region28: #{encoder_rnn_forward.2} parent=0 // pred_region
    _
  $region29: #{encoder_rnn_forward.2} parent=0 // pred_fallthru
    _
  // Predicated region
  $region30: #{encoder_rnn_forward.2} parent=0 // pred_check
    _
  $region31: #{encoder_rnn_forward.2} parent=0 // pred_check_branch
    %646 = sbr.rel (0) target = $region33
  $region32: #{encoder_rnn_forward.2} parent=0 // pred_region
    _
  $region33: #{encoder_rnn_forward.2} parent=0 // pred_fallthru
    _
  // Predicated region
  $region34: #{encoder_rnn_forward.2} parent=0 // pred_check
    _
  $region35: #{encoder_rnn_forward.2} parent=0 // pred_check_branch
    %648 = sbr.rel (0) target = $region37
  $region36: #{encoder_rnn_forward.2} parent=0 // pred_region
    _
  $region37: #{encoder_rnn_forward.2} parent=0 // pred_fallthru
    _
  // Predicated region
  $region38: #{encoder_rnn_forward.2} parent=0 // pred_check
    _
  $region39: #{encoder_rnn_forward.2} parent=0 // pred_check_branch
    %650 = sbr.rel (0) target = $region41
  $region40: #{encoder_rnn_forward.2} parent=0 // pred_region
    _
  $region41: #{encoder_rnn_forward.2} parent=0 // pred_fallthru
    _
  // Predicated region
  $region42: #{encoder_rnn_forward.2} parent=0 // pred_check
    _
  $region43: #{encoder_rnn_forward.2} parent=0 // pred_check_branch
    %652 = sbr.rel (0) target = $region45
  $region44: #{encoder_rnn_forward.2} parent=0 // pred_region
    _
  $region45: #{encoder_rnn_forward.2} parent=0 // pred_fallthru
    _

</llo_original>
